<compile_context>
chip_gen: v6e
topology: v6e:2x2x1
jax: 0.10.0
libtpu: 0.0.40
codegen_flags: <defaults>
</compile_context>

<pallas_src>
import functools

import jax
import jax.numpy as jnp
from jax.experimental import pallas as pl
from jax.experimental.pallas import tpu as pltpu


def _qnetwork_kernel(s_ref, a_ref, w1s_ref, w1a_ref, b14_ref, w25_ref,
                     b25_ref, w36_ref, b36_ref, o_ref):
    """One batch tile: both Q heads fused into single wide layers -> (T, 2)."""
    # Fused concat: xu @ W14 == state @ W14[:S] + action @ W14[S:].
    # bf16 MXU operands, f32 accumulation.
    s16 = s_ref[...].astype(jnp.bfloat16)
    a16 = a_ref[...].astype(jnp.bfloat16)
    h = jnp.dot(s16, w1s_ref[...], preferred_element_type=jnp.float32)
    h = h + jnp.dot(a16, w1a_ref[...], preferred_element_type=jnp.float32)
    h = jnp.maximum(h + b14_ref[...], 0.0)                      # (T, 2H) f32

    # Second layer: block-diagonal fused weight keeps the heads independent.
    h = jnp.dot(h.astype(jnp.bfloat16), w25_ref[...],
                preferred_element_type=jnp.float32)
    h = jnp.maximum(h + b25_ref[...], 0.0)                      # (T, 2H) f32

    # 1-wide output layers: VPU multiply + segmented lane reduce (f32).
    H = w36_ref.shape[1] // 2
    p = h * w36_ref[...]
    q1 = jnp.sum(p[:, :H], axis=-1, keepdims=True) + b36_ref[0]  # (T, 1)
    q2 = jnp.sum(p[:, H:], axis=-1, keepdims=True) + b36_ref[1]  # (T, 1)
    o_ref[...] = jnp.concatenate([q1, q2], axis=1).astype(o_ref.dtype)


@functools.partial(jax.jit, static_argnames=("tile_b",))
def qnetwork_forward(state, action, params, *, tile_b=4096):
    """state: (B, num_inputs), action: (B, num_actions) -> (q1, q2), each (B, 1)."""
    assert tile_b % 128 == 0, "tile_b must be a multiple of 128"
    B, S = state.shape
    _, A = action.shape
    H = params["w1"].shape[1]

    # --- Fuse the two heads' parameters (tiny ops, fused under jit) ---------
    w1s = jnp.concatenate([params["w1"][:S], params["w4"][:S]], axis=1)   # (S, 2H)
    w1a = jnp.concatenate([params["w1"][S:], params["w4"][S:]], axis=1)   # (A, 2H)
    b14 = jnp.concatenate([params["b1"], params["b4"]], axis=1)           # (1, 2H)
    zeros = jnp.zeros((H, H), jnp.float32)
    w25 = jnp.block([[params["w2"], zeros], [zeros, params["w5"]]])       # (2H, 2H)
    b25 = jnp.concatenate([params["b2"], params["b5"]], axis=1)           # (1, 2H)
    w36 = jnp.concatenate([params["w3"], params["w6"]], axis=1)           # (1, 2H)
    b36 = jnp.concatenate([params["b3"].reshape(1), params["b6"].reshape(1)])

    # MXU operands in bf16 (f32 accumulate in-kernel); VPU-side params stay f32.
    w1s = w1s.astype(jnp.bfloat16)
    w1a = w1a.astype(jnp.bfloat16)
    w25 = w25.astype(jnp.bfloat16)

    # --- Batch tile selection (static) --------------------------------------
    # Small batches: single full-array block.  Large batches: sublane-aligned
    # tiles capped at tile_b, aiming for >=2 grid steps (v7x megacore).
    if B <= min(tile_b, 256):
        tile = B
    else:
        half_rounded = ((-(-B // 2) + 127) // 128) * 128
        tile = max(128, min(tile_b, half_rounded))
    grid = (pl.cdiv(B, tile),)   # trailing partial block handled by Pallas masking

    def resident(arr):            # fetched once, revisited every grid step
        return pl.BlockSpec(arr.shape, lambda i: (0, 0))

    out = pl.pallas_call(
        _qnetwork_kernel,
        out_shape=jax.ShapeDtypeStruct((B, 2), jnp.float32),
        grid=grid,
        in_specs=[
            pl.BlockSpec((tile, S), lambda i: (i, 0)),            # state  (batch-tiled)
            pl.BlockSpec((tile, A), lambda i: (i, 0)),            # action (batch-tiled)
            resident(w1s), resident(w1a), resident(b14),
            resident(w25), resident(b25), resident(w36),
            pl.BlockSpec(memory_space=pltpu.MemorySpace.SMEM),    # [b3, b6]
        ],
        out_specs=pl.BlockSpec((tile, 2), lambda i: (i, 0)),
        compiler_params=pltpu.CompilerParams(
            dimension_semantics=("parallel",),
            vmem_limit_bytes=32 * 1024 * 1024),
    )(state, action, w1s, w1a, b14, w25, b25, w36, b36)

    return out[:, 0:1], out[:, 1:2]


def init_qnetwork_params(key, num_inputs, num_actions, hidden_dim):
    """xavier_uniform_(gain=1) weights, zero biases (matches weights_init_).

    Hidden-layer weights are stored transposed to (in, out); the 1-wide output
    weights keep the PyTorch (1, hidden) row layout.
    """
    def xavier(k, fan_out, fan_in):
        limit = jnp.sqrt(6.0 / (fan_in + fan_out))
        return jax.random.uniform(k, (fan_out, fan_in), jnp.float32,
                                  minval=-limit, maxval=limit)

    d = num_inputs + num_actions
    ks = jax.random.split(key, 6)
    return {
        "w1": xavier(ks[0], hidden_dim, d).T,           # (D, H)
        "b1": jnp.zeros((1, hidden_dim), jnp.float32),
        "w2": xavier(ks[1], hidden_dim, hidden_dim).T,  # (H, H)
        "b2": jnp.zeros((1, hidden_dim), jnp.float32),
        "w3": xavier(ks[2], 1, hidden_dim),             # (1, H) row
        "b3": jnp.zeros((1,), jnp.float32),
        "w4": xavier(ks[3], hidden_dim, d).T,
        "b4": jnp.zeros((1, hidden_dim), jnp.float32),
        "w5": xavier(ks[4], hidden_dim, hidden_dim).T,
        "b5": jnp.zeros((1, hidden_dim), jnp.float32),
        "w6": xavier(ks[5], 1, hidden_dim),
        "b6": jnp.zeros((1,), jnp.float32),
    }


def _qnetwork_reference(state, action, params):
    """Plain-JAX f32 forward with identical math to the PyTorch module."""
    xu = jnp.concatenate([state, action], axis=1)
    h = jnp.maximum(xu @ params["w1"] + params["b1"], 0.0)
    h = jnp.maximum(h @ params["w2"] + params["b2"], 0.0)
    q1 = jnp.sum(h * params["w3"], axis=-1, keepdims=True) + params["b3"]
    g = jnp.maximum(xu @ params["w4"] + params["b4"], 0.0)
    g = jnp.maximum(g @ params["w5"] + params["b5"], 0.0)
    q2 = jnp.sum(g * params["w6"], axis=-1, keepdims=True) + params["b6"]
    return q1, q2


if __name__ == "__main__":
    num_inputs, num_actions, hidden_dim = 16, 4, 32

    key = jax.random.PRNGKey(0)
    pkey, sk1, ak1, sk2, ak2 = jax.random.split(key, 5)
    params = init_qnetwork_params(pkey, num_inputs, num_actions, hidden_dim)

    # bf16 MXU operands -> loosened tolerance vs the f32 reference.
    TOL = dict(atol=5e-2, rtol=5e-2)

    # Case 1: small batch -> single grid point (block == full array).
    state = jax.random.normal(sk1, (8, num_inputs), jnp.float32)
    action = jax.random.normal(ak1, (8, num_actions), jnp.float32)
    q1, q2 = jax.block_until_ready(qnetwork_forward(state, action, params))
    r1, r2 = _qnetwork_reference(state, action, params)
    assert q1.shape == (8, 1) and q2.shape == (8, 1)
    assert jnp.allclose(q1, r1, **TOL)
    assert jnp.allclose(q2, r2, **TOL)

    # Case 2: larger batch exercising the batch grid + masked trailing
    # partial block (B=200, tile=128 -> grid=(2,), last block is partial).
    state2 = jax.random.normal(sk2, (200, num_inputs), jnp.float32)
    action2 = jax.random.normal(ak2, (200, num_actions), jnp.float32)
    q1b, q2b = jax.block_until_ready(
        qnetwork_forward(state2, action2, params, tile_b=128))
    r1b, r2b = _qnetwork_reference(state2, action2, params)
    assert q1b.shape == (200, 1) and q2b.shape == (200, 1)
    assert jnp.allclose(q1b, r1b, **TOL)
    assert jnp.allclose(q2b, r2b, **TOL)

    print("KERNEL_OK")
</pallas_src>

<mosaic_0001>
module attributes {stable_mosaic.version = 11 : i64} {
  func.func @_qnetwork_kernel(%arg0: i32, %arg1: memref<8x16xf32, #tpu.memory_space<vmem>>, %arg2: memref<8x4xf32, #tpu.memory_space<vmem>>, %arg3: memref<16x64xbf16, #tpu.memory_space<vmem>>, %arg4: memref<4x64xbf16, #tpu.memory_space<vmem>>, %arg5: memref<1x64xf32, #tpu.memory_space<vmem>>, %arg6: memref<64x64xbf16, #tpu.memory_space<vmem>>, %arg7: memref<1x64xf32, #tpu.memory_space<vmem>>, %arg8: memref<1x64xf32, #tpu.memory_space<vmem>>, %arg9: memref<2xf32, #tpu.memory_space<smem>>, %arg10: memref<8x2xf32, #tpu.memory_space<vmem>>) attributes {dimension_semantics = [#tpu.dimension_semantics<parallel>], iteration_bounds = array<i64: 1>, scalar_prefetch = 0 : i64, scratch_operands = 0 : i64, tpu.core_type = #tpu.core_type<tc>, window_params = [{transform_indices = @transform_0, window_bounds = array<i64: 8, 16>}, {transform_indices = @transform_1, window_bounds = array<i64: 8, 4>}, {pipeline_mode = #tpu.pipeline_mode<synchronous>, transform_indices = @transform_2, window_bounds = array<i64: 16, 64>}, {pipeline_mode = #tpu.pipeline_mode<synchronous>, transform_indices = @transform_3, window_bounds = array<i64: 4, 64>}, {pipeline_mode = #tpu.pipeline_mode<synchronous>, transform_indices = @transform_4, window_bounds = array<i64: 1, 64>}, {pipeline_mode = #tpu.pipeline_mode<synchronous>, transform_indices = @transform_5, window_bounds = array<i64: 64, 64>}, {pipeline_mode = #tpu.pipeline_mode<synchronous>, transform_indices = @transform_6, window_bounds = array<i64: 1, 64>}, {pipeline_mode = #tpu.pipeline_mode<synchronous>, transform_indices = @transform_7, window_bounds = array<i64: 1, 64>}, {transform_indices = @transform_8, window_bounds = array<i64: 2>}, {transform_indices = @transform_9, window_bounds = array<i64: 8, 2>}]} {
    %c0 = arith.constant 0 : index
    %c0_0 = arith.constant 0 : index
    %0 = vector.load %arg1[%c0, %c0_0] : memref<8x16xf32, #tpu.memory_space<vmem>>, vector<8x16xf32>
    %1 = arith.truncf %0 : vector<8x16xf32> to vector<8x16xbf16>
    %c0_1 = arith.constant 0 : index
    %c0_2 = arith.constant 0 : index
    %2 = vector.load %arg2[%c0_1, %c0_2] : memref<8x4xf32, #tpu.memory_space<vmem>>, vector<8x4xf32>
    %3 = arith.truncf %2 : vector<8x4xf32> to vector<8x4xbf16>
    %c0_3 = arith.constant 0 : index
    %c0_4 = arith.constant 0 : index
    %4 = vector.load %arg3[%c0_3, %c0_4] : memref<16x64xbf16, #tpu.memory_space<vmem>>, vector<16x64xbf16>
    %cst = arith.constant dense<0.000000e+00> : vector<8x64xf32>
    %5 = tpu.matmul %1, %4, %cst {dimension_numbers = #tpu.dot_dimension_numbers<[1], [0], [0], [1], [0, 0, 1, 1], [], []>} : vector<8x16xbf16>, vector<16x64xbf16>, vector<8x64xf32> -> vector<8x64xf32>
    %c0_5 = arith.constant 0 : index
    %c0_6 = arith.constant 0 : index
    %6 = vector.load %arg4[%c0_5, %c0_6] : memref<4x64xbf16, #tpu.memory_space<vmem>>, vector<4x64xbf16>
    %cst_7 = arith.constant dense<0.000000e+00> : vector<8x64xf32>
    %7 = tpu.matmul %3, %6, %cst_7 {dimension_numbers = #tpu.dot_dimension_numbers<[1], [0], [0], [1], [0, 0, 1, 1], [], []>} : vector<8x4xbf16>, vector<4x64xbf16>, vector<8x64xf32> -> vector<8x64xf32>
    %8 = arith.addf %5, %7 : vector<8x64xf32>
    %c0_8 = arith.constant 0 : index
    %c0_9 = arith.constant 0 : index
    %9 = vector.load %arg5[%c0_8, %c0_9] : memref<1x64xf32, #tpu.memory_space<vmem>>, vector<1x64xf32>
    %10 = vector.broadcast %9 : vector<1x64xf32> to vector<8x64xf32>
    %11 = arith.addf %8, %10 : vector<8x64xf32>
    %cst_10 = arith.constant 0.000000e+00 : f32
    %12 = vector.broadcast %cst_10 : f32 to vector<8x64xf32>
    %13 = arith.maximumf %11, %12 : vector<8x64xf32>
    %14 = arith.truncf %13 : vector<8x64xf32> to vector<8x64xbf16>
    %c0_11 = arith.constant 0 : index
    %c0_12 = arith.constant 0 : index
    %15 = vector.load %arg6[%c0_11, %c0_12] : memref<64x64xbf16, #tpu.memory_space<vmem>>, vector<64x64xbf16>
    %cst_13 = arith.constant dense<0.000000e+00> : vector<8x64xf32>
    %16 = tpu.matmul %14, %15, %cst_13 {dimension_numbers = #tpu.dot_dimension_numbers<[1], [0], [0], [1], [0, 0, 1, 1], [], []>} : vector<8x64xbf16>, vector<64x64xbf16>, vector<8x64xf32> -> vector<8x64xf32>
    %c0_14 = arith.constant 0 : index
    %c0_15 = arith.constant 0 : index
    %17 = vector.load %arg7[%c0_14, %c0_15] : memref<1x64xf32, #tpu.memory_space<vmem>>, vector<1x64xf32>
    %18 = vector.broadcast %17 : vector<1x64xf32> to vector<8x64xf32>
    %19 = arith.addf %16, %18 : vector<8x64xf32>
    %cst_16 = arith.constant 0.000000e+00 : f32
    %20 = vector.broadcast %cst_16 : f32 to vector<8x64xf32>
    %21 = arith.maximumf %19, %20 : vector<8x64xf32>
    %c0_17 = arith.constant 0 : index
    %c0_18 = arith.constant 0 : index
    %22 = vector.load %arg8[%c0_17, %c0_18] : memref<1x64xf32, #tpu.memory_space<vmem>>, vector<1x64xf32>
    %23 = vector.broadcast %22 : vector<1x64xf32> to vector<8x64xf32>
    %24 = arith.mulf %21, %23 : vector<8x64xf32>
    %25 = vector.extract_strided_slice %24 {offsets = [0, 0], sizes = [8, 32], strides = [1, 1]} : vector<8x64xf32> to vector<8x32xf32>
    %cst_19 = arith.constant dense<0.000000e+00> : vector<8xf32>
    %26 = vector.multi_reduction <add>, %25, %cst_19 [1] : vector<8x32xf32> to vector<8xf32>
    %27 = vector.shape_cast %26 : vector<8xf32> to vector<8x1xf32>
    %c0_20 = arith.constant 0 : index
    %28 = memref.load %arg9[%c0_20] : memref<2xf32, #tpu.memory_space<smem>>
    %29 = vector.broadcast %28 : f32 to vector<8x1xf32>
    %30 = arith.addf %27, %29 : vector<8x1xf32>
    %31 = vector.extract_strided_slice %24 {offsets = [0, 32], sizes = [8, 32], strides = [1, 1]} : vector<8x64xf32> to vector<8x32xf32>
    %cst_21 = arith.constant dense<0.000000e+00> : vector<8xf32>
    %32 = vector.multi_reduction <add>, %31, %cst_21 [1] : vector<8x32xf32> to vector<8xf32>
    %33 = vector.shape_cast %32 : vector<8xf32> to vector<8x1xf32>
    %c1 = arith.constant 1 : index
    %34 = memref.load %arg9[%c1] : memref<2xf32, #tpu.memory_space<smem>>
    %35 = vector.broadcast %34 : f32 to vector<8x1xf32>
    %36 = arith.addf %33, %35 : vector<8x1xf32>
    %37 = tpu.concatenate %30, %36 in 1 : vector<8x1xf32>, vector<8x1xf32> -> vector<8x2xf32>
    %c0_22 = arith.constant 0 : index
    %c0_23 = arith.constant 0 : index
    %38 = vector.load %arg10[%c0_22, %c0_23] : memref<8x2xf32, #tpu.memory_space<vmem>>, vector<8x2xf32>
    tpu.vector_store %arg10[%c0_22, %c0_23], %37 {strides = array<i32>} : memref<8x2xf32, #tpu.memory_space<vmem>>, vector<8x2xf32>,
    return
  }
  func.func @transform_0(%arg0: i32) -> (i32, i32) {
    %c0_i32 = arith.constant 0 : i32
    %c0_i32_0 = arith.constant 0 : i32
    return %arg0, %c0_i32 : i32, i32
  }
  func.func @transform_1(%arg0: i32) -> (i32, i32) {
    %c0_i32 = arith.constant 0 : i32
    %c0_i32_0 = arith.constant 0 : i32
    return %arg0, %c0_i32 : i32, i32
  }
  func.func @transform_2(%arg0: i32) -> (i32, i32) {
    %c0_i32 = arith.constant 0 : i32
    %c0_i32_0 = arith.constant 0 : i32
    %c0_i32_1 = arith.constant 0 : i32
    return %c0_i32, %c0_i32_0 : i32, i32
  }
  func.func @transform_3(%arg0: i32) -> (i32, i32) {
    %c0_i32 = arith.constant 0 : i32
    %c0_i32_0 = arith.constant 0 : i32
    %c0_i32_1 = arith.constant 0 : i32
    return %c0_i32, %c0_i32_0 : i32, i32
  }
  func.func @transform_4(%arg0: i32) -> (i32, i32) {
    %c0_i32 = arith.constant 0 : i32
    %c0_i32_0 = arith.constant 0 : i32
    %c0_i32_1 = arith.constant 0 : i32
    return %c0_i32, %c0_i32_0 : i32, i32
  }
  func.func @transform_5(%arg0: i32) -> (i32, i32) {
    %c0_i32 = arith.constant 0 : i32
    %c0_i32_0 = arith.constant 0 : i32
    %c0_i32_1 = arith.constant 0 : i32
    return %c0_i32, %c0_i32_0 : i32, i32
  }
  func.func @transform_6(%arg0: i32) -> (i32, i32) {
    %c0_i32 = arith.constant 0 : i32
    %c0_i32_0 = arith.constant 0 : i32
    %c0_i32_1 = arith.constant 0 : i32
    return %c0_i32, %c0_i32_0 : i32, i32
  }
  func.func @transform_7(%arg0: i32) -> (i32, i32) {
    %c0_i32 = arith.constant 0 : i32
    %c0_i32_0 = arith.constant 0 : i32
    %c0_i32_1 = arith.constant 0 : i32
    return %c0_i32, %c0_i32_0 : i32, i32
  }
  func.func @transform_8(%arg0: i32) -> i32 {
    %c0_i32 = arith.constant 0 : i32
    %c0_i32_0 = arith.constant 0 : i32
    return %c0_i32 : i32
  }
  func.func @transform_9(%arg0: i32) -> (i32, i32) {
    %c0_i32 = arith.constant 0 : i32
    %c0_i32_0 = arith.constant 0 : i32
    return %arg0, %c0_i32 : i32, i32
  }
}

</mosaic_0001>

<llo_original>
// kernel: qnetwork_forward.1
$region0: #{qnetwork_forward.1}
  #allocation0 [shape = 'u32[]', space=smem, size = 0x4, offset = 0x4, fixed_abs, tag = 'smem constant byte address 0x4 - core index']
  #allocation1 [shape = 'u32[144,128]{1,0:T(1,128)}', space=vmem, size = 0x12000, scoped, tag = 'internal scratch']
  %s0 = inlined_call_operand.vmem [shape: f32[8,16], index: 0, kind: input, shape index: {}]
  %s1 = inlined_call_operand.vmem [shape: f32[8,4], index: 1, kind: input, shape index: {}]
  %s2 = inlined_call_operand.vmem [shape: bf16[16,64], index: 2, kind: input, shape index: {}]
  %s3 = inlined_call_operand.vmem [shape: bf16[4,64], index: 3, kind: input, shape index: {}]
  %s4 = inlined_call_operand.vmem [shape: f32[1,64], index: 4, kind: input, shape index: {}]
  %s5 = inlined_call_operand.vmem [shape: bf16[64,64], index: 5, kind: input, shape index: {}]
  %s6 = inlined_call_operand.vmem [shape: f32[1,64], index: 6, kind: input, shape index: {}]
  %s7 = inlined_call_operand.vmem [shape: f32[1,64], index: 7, kind: input, shape index: {}]
  %s8 = inlined_call_operand.vmem [shape: f32[2], index: 8, kind: input, shape index: {}]
  %s9 = inlined_call_operand.vmem [shape: f32[8,2], index: 9, kind: output, shape index: {}]
  %s10 = sld [smem:[#allocation0]]
  $region50: #{qnetwork_forward.1} parent=0
    _
  %s12 = ssub.s32 1, %s10
  %s13 = scalar_select 0, %s12, %s10
  $region1: #{qnetwork_forward.1} parent=0
    #allocation2 [shape = 'u8[512]{0}', space=smem, size = 0x200, scoped, tag = 'input window, operand 8, single buffered']
    #allocation3 [shape = 's32[1]{0}', space=sflag, size = 0x4, scoped, tag = 'scoped memory for qnetwork_forward.1']
    %14 = vsyncpa [#allocation3], 0
    // Predicated region
    $region2: #{qnetwork_forward.1} parent=1 // pred_check
      _
    $region3: #{qnetwork_forward.1} parent=1 // pred_check_branch
      %16 = sbr.rel (0) target = $region5
    $region4: #{qnetwork_forward.1} parent=1 // pred_region
      _
    $region5: #{qnetwork_forward.1} parent=1 // pred_fallthru
      _
    // Predicated region
    $region6: #{qnetwork_forward.1} parent=1 // pred_check
      _
    $region7: #{qnetwork_forward.1} parent=1 // pred_check_branch
      %18 = sbr.rel (0) target = $region9
    $region8: #{qnetwork_forward.1} parent=1 // pred_region
      _
    $region9: #{qnetwork_forward.1} parent=1 // pred_fallthru
      _
    // Predicated region
    $region10: #{qnetwork_forward.1} parent=1 // pred_check
      _
    $region11: #{qnetwork_forward.1} parent=1 // pred_check_branch
      %20 = sbr.rel (0) target = $region13
    $region12: #{qnetwork_forward.1} parent=1 // pred_region
      _
    $region13: #{qnetwork_forward.1} parent=1 // pred_fallthru
      _
    // Predicated region
    $region14: #{qnetwork_forward.1} parent=1 // pred_check
      _
    $region15: #{qnetwork_forward.1} parent=1 // pred_check_branch
      %22 = sbr.rel (0) target = $region17
    $region16: #{qnetwork_forward.1} parent=1 // pred_region
      _
    $region17: #{qnetwork_forward.1} parent=1 // pred_fallthru
      _
    // Predicated region
    $region18: #{qnetwork_forward.1} parent=1 // pred_check
      _
    $region19: #{qnetwork_forward.1} parent=1 // pred_check_branch
      %24 = sbr.rel (0) target = $region21
    $region20: #{qnetwork_forward.1} parent=1 // pred_region
      _
    $region21: #{qnetwork_forward.1} parent=1 // pred_fallthru
      _
    // Predicated region
    $region22: #{qnetwork_forward.1} parent=1 // pred_check
      _
    $region23: #{qnetwork_forward.1} parent=1 // pred_check_branch
      %26 = sbr.rel (0) target = $region25
    $region24: #{qnetwork_forward.1} parent=1 // pred_region
      _
    $region25: #{qnetwork_forward.1} parent=1 // pred_fallthru
      _
    // Predicated region
    $region26: #{qnetwork_forward.1} parent=1 // pred_check
      _
    $region27: #{qnetwork_forward.1} parent=1 // pred_check_branch
      %28 = sbr.rel (0) target = $region29
    $region28: #{qnetwork_forward.1} parent=1 // pred_region
      _
    $region29: #{qnetwork_forward.1} parent=1 // pred_fallthru
      _
    // Predicated region
    $region30: #{qnetwork_forward.1} parent=1 // pred_check
      _
    $region31: #{qnetwork_forward.1} parent=1 // pred_check_branch
      %30 = sbr.rel (0) target = $region33
    $region32: #{qnetwork_forward.1} parent=1 // pred_region
      _
    $region33: #{qnetwork_forward.1} parent=1 // pred_fallthru
      _
    // Predicated region
    $region34: #{qnetwork_forward.1} parent=1 // pred_check
      _
    $region35: #{qnetwork_forward.1} parent=1 // pred_check_branch
      %32 = sbr.rel (0) target = $region37
    $region36: #{qnetwork_forward.1} parent=1 // pred_region
      %s34 = ssub.s32 16, 16
      %35 = vsyncadd [#allocation3], %s34
      %s37 = sshll.u32 %s8, 4
      %s38 = int_to_ptr.vmem [resolvable:$true] %s37
      %40 = dma.vmem_to_smem %s38, 16, [#allocation2], [#allocation3]
    $region37: #{qnetwork_forward.1} parent=1 // pred_fallthru
      _
    // Predicated region
    $region38: #{qnetwork_forward.1} parent=1 // pred_check
      _
    $region39: #{qnetwork_forward.1} parent=1 // pred_check_branch
      %42 = sbr.rel (0) target = $region41
    $region40: #{qnetwork_forward.1} parent=1 // pred_region
      %43 = dma.done [#allocation3], 16
    $region41: #{qnetwork_forward.1} parent=1 // pred_fallthru
      _
    %44 = sfence
    %v46 = vld [vmem:[%s0] sm:$0xff]
    %v47 = vpack.c.bf16 %v46, %v46
    %v48 = vld [vmem:[%s1] sm:$0xff]
    %v49 = vpack.c.bf16 %v48, %v48
    %v50 = vld [vmem:[%s2] sm:$0xf]
    %v51 = vld [vmem:[%s2 + $0x4] sm:$0xf]
    %v52 = vld [vmem:[%s3] sm:$0x3]
    %vm53 = vcmask 31744
    %v55 = vsel %vm53, %v49, 0
    %vm57 = vcmask 1041408
    %v59 = vsel %vm57, %v52, 0
    %61 = vmatprep.subr.bf16.mxu0 0
    %62 = vmatpush1.bf16.msra.mxu0 0
    %63 = vmatprep.subr.bf16.mxu0 0
    %64 = vmatpush1.bf16.msra.mxu0 0
    %65 = vmatprep.subr.bf16.mxu0 0
    %66 = vmatpush1.bf16.msra.mxu0 0
    %67 = vmatprep.subr.bf16.mxu0 0
    %68 = vmatpush1.bf16.msra.mxu0 0
    %69 = vmatprep.subr.bf16.mxu0 0
    %70 = vmatpush1.bf16.msra.mxu0 0
    %71 = vmatprep.subr.bf16.mxu0 0
    %72 = vmatpush1.bf16.msra.mxu0 0
    %73 = vmatprep.subr.bf16.mxu0 0
    %74 = vmatpush1.bf16.msra.mxu0 0
    %75 = vmatprep.subr.bf16.mxu0 0
    %76 = vmatpush1.bf16.msra.mxu0 %v59
    %77 = vmatprep.subr.bf16.mxu0 0
    %78 = vmatpush2.bf16.msra.mxu0 0
    %79 = vmatprep.subr.bf16.mxu0 0
    %80 = vmatpush2.bf16.msra.mxu0 0
    %81 = vmatprep.subr.bf16.mxu0 0
    %82 = vmatpush2.bf16.msra.mxu0 0
    %83 = vmatprep.subr.bf16.mxu0 0
    %84 = vmatpush2.bf16.msra.mxu0 0
    %85 = vmatprep.subr.bf16.mxu0 0
    %86 = vmatpush2.bf16.msra.mxu0 0
    %87 = vmatprep.subr.bf16.mxu0 0
    %88 = vmatpush2.bf16.msra.mxu0 0
    %89 = vmatprep.subr.bf16.mxu0 0
    %90 = vmatpush2.bf16.msra.mxu0 0
    %91 = vmatprep.subr.bf16.mxu0 0
    %92 = vmatpush2.bf16.msra.mxu0 0
    %93 = vmatprep.mubr.bf16.mxu0 0
    %94 = vmatmul.mubr.bf16.gmra.mxu0 %v55
    %v95 = vpop.f32.mrf.mxu0
    %v96 = vadd.f32 0.0, %v95
    %v97 = vpop.f32.mrf.mxu0
    %v98 = vpop.f32.mrf.mxu0
    %v99 = vpop.f32.mrf.mxu0
    %100 = vdwg.mxu0
    %v103 = vunpack.c.l.b16 %v50
    %v104 = vunpack.c.l.b16 %v51
    %v105 = vpack.c.b16 %v104, %v103
    %vm107 = vcmask 130048
    %v109 = vsel %vm107, %v47, 0
    %111 = vmatprep.subr.bf16.mxu0 0
    %112 = vmatpush1.bf16.msra.mxu0 0
    %113 = vmatprep.subr.bf16.mxu0 0
    %114 = vmatpush1.bf16.msra.mxu0 0
    %115 = vmatprep.subr.bf16.mxu0 0
    %116 = vmatpush1.bf16.msra.mxu0 0
    %117 = vmatprep.subr.bf16.mxu0 0
    %118 = vmatpush1.bf16.msra.mxu0 0
    %119 = vmatprep.subr.bf16.mxu0 0
    %120 = vmatpush1.bf16.msra.mxu0 0
    %121 = vmatprep.subr.bf16.mxu0 0
    %122 = vmatpush1.bf16.msra.mxu0 0
    %123 = vmatprep.subr.bf16.mxu0 0
    %124 = vmatpush1.bf16.msra.mxu0 0
    %125 = vmatprep.subr.bf16.mxu0 0
    %126 = vmatpush1.bf16.msra.mxu0 %v105
    %127 = vmatprep.subr.bf16.mxu0 0
    %128 = vmatpush2.bf16.msra.mxu0 0
    %129 = vmatprep.subr.bf16.mxu0 0
    %130 = vmatpush2.bf16.msra.mxu0 0
    %131 = vmatprep.subr.bf16.mxu0 0
    %132 = vmatpush2.bf16.msra.mxu0 0
    %133 = vmatprep.subr.bf16.mxu0 0
    %134 = vmatpush2.bf16.msra.mxu0 0
    %135 = vmatprep.subr.bf16.mxu0 0
    %136 = vmatpush2.bf16.msra.mxu0 0
    %137 = vmatprep.subr.bf16.mxu0 0
    %138 = vmatpush2.bf16.msra.mxu0 0
    %139 = vmatprep.subr.bf16.mxu0 0
    %140 = vmatpush2.bf16.msra.mxu0 0
    %141 = vmatprep.subr.bf16.mxu0 0
    %142 = vmatpush2.bf16.msra.mxu0 0
    %143 = vmatprep.mubr.bf16.mxu0 0
    %144 = vmatmul.mubr.bf16.gmra.mxu0 %v109
    %v145 = vpop.f32.mrf.mxu0
    %v146 = vadd.f32 %v96, %v145
    %v147 = vpop.f32.mrf.mxu0
    %v148 = vpop.f32.mrf.mxu0
    %v149 = vpop.f32.mrf.mxu0
    %150 = vdwg.mxu0
    %v151 = vld [vmem:[%s4] sm:$0x1]
    %v153 = vlaneseq
    %v154 = vshrl.u32 %v153, 7
    %v155 = vsub.s32 0, %v154
    %v156 = vrot.slane %v151, %v155
    %v158 = vadd.f32 %v146, %v156
    %v159 = vmax.f32 %v158, 0.0
    %v160 = vpack.c.bf16 %v159, %v159
    %v161 = vld [vmem:[%s5] sm:$0xf]
    %v162 = vld [vmem:[%s5 + $0x4] sm:$0xf]
    %v163 = vld [vmem:[%s5 + $0x8] sm:$0xf]
    %v164 = vld [vmem:[%s5 + $0xc] sm:$0xf]
    %v165 = vld [vmem:[%s5 + $0x10] sm:$0xf]
    %v166 = vld [vmem:[%s5 + $0x14] sm:$0xf]
    %v167 = vld [vmem:[%s5 + $0x18] sm:$0xf]
    %v168 = vld [vmem:[%s5 + $0x1c] sm:$0xf]
    %v169 = vld [vmem:[%s6] sm:$0x1]
    %v171 = vlaneseq
    %v172 = vshrl.u32 %v171, 7
    %v173 = vsub.s32 0, %v172
    %v174 = vrot.slane %v169, %v173
    %v184 = vunpack.c.l.b16 %v161
    %v185 = vunpack.c.l.b16 %v162
    %v186 = vunpack.c.l.b16 %v163
    %v187 = vunpack.c.l.b16 %v164
    %v188 = vunpack.c.l.b16 %v165
    %v189 = vunpack.c.l.b16 %v166
    %v190 = vunpack.c.l.b16 %v167
    %v191 = vunpack.c.l.b16 %v168
    %v192 = vpack.c.b16 %v185, %v184
    %v193 = vpack.c.b16 %v187, %v186
    %v194 = vpack.c.b16 %v189, %v188
    %v195 = vpack.c.b16 %v191, %v190
    %vm200 = vcmask 523264
    %v202 = vsel %vm200, %v160, 0
    %204 = vmatprep.subr.bf16.mxu0 0
    %205 = vmatpush1.bf16.msra.mxu0 0
    %206 = vmatprep.subr.bf16.mxu0 0
    %207 = vmatpush1.bf16.msra.mxu0 0
    %208 = vmatprep.subr.bf16.mxu0 0
    %209 = vmatpush1.bf16.msra.mxu0 0
    %210 = vmatprep.subr.bf16.mxu0 0
    %211 = vmatpush1.bf16.msra.mxu0 0
    %212 = vmatprep.subr.bf16.mxu0 0
    %213 = vmatpush1.bf16.msra.mxu0 %v195
    %214 = vmatprep.subr.bf16.mxu0 0
    %215 = vmatpush1.bf16.msra.mxu0 %v194
    %216 = vmatprep.subr.bf16.mxu0 0
    %217 = vmatpush1.bf16.msra.mxu0 %v193
    %218 = vmatprep.subr.bf16.mxu0 0
    %219 = vmatpush1.bf16.msra.mxu0 %v192
    %220 = vmatprep.subr.bf16.mxu0 0
    %221 = vmatpush2.bf16.msra.mxu0 0
    %222 = vmatprep.subr.bf16.mxu0 0
    %223 = vmatpush2.bf16.msra.mxu0 0
    %224 = vmatprep.subr.bf16.mxu0 0
    %225 = vmatpush2.bf16.msra.mxu0 0
    %226 = vmatprep.subr.bf16.mxu0 0
    %227 = vmatpush2.bf16.msra.mxu0 0
    %228 = vmatprep.subr.bf16.mxu0 0
    %229 = vmatpush2.bf16.msra.mxu0 0
    %230 = vmatprep.subr.bf16.mxu0 0
    %231 = vmatpush2.bf16.msra.mxu0 0
    %232 = vmatprep.subr.bf16.mxu0 0
    %233 = vmatpush2.bf16.msra.mxu0 0
    %234 = vmatprep.subr.bf16.mxu0 0
    %235 = vmatpush2.bf16.msra.mxu0 0
    %236 = vmatprep.mubr.bf16.mxu0 0
    %237 = vmatmul.mubr.bf16.gmra.mxu0 %v202
    %v238 = vpop.f32.mrf.mxu0
    %v239 = vadd.f32 %v174, %v238
    %v240 = vpop.f32.mrf.mxu0
    %v241 = vpop.f32.mrf.mxu0
    %v242 = vpop.f32.mrf.mxu0
    %243 = vdwg.mxu0
    %v244 = vmax.f32 %v239, 0.0
    %v245 = vld [vmem:[%s7] sm:$0x1]
    %v247 = vlaneseq
    %v248 = vshrl.u32 %v247, 7
    %v249 = vsub.s32 0, %v248
    %v250 = vrot.slane %v245, %v249
    %v252 = vmul.f32 %v244, %v250
    %vm253 = vcmask 261120
    %v254 = vsel %vm253, %v252, 0.0
    %255 = vadd.xlane.f32.xlu0 %v254
    %v256 = vpop.xlane.xlu0 %255
    %s257 = sld [smem:[#allocation2]]
    %v258 = vstv %s257
    %v259 = vadd.f32 %v256, %v258
    %261 = vrot.lane.b32.xlu0 %v252, 96
    %v262 = vpop.permute.xlu0 %261
    %v264 = vsel %vm253, %v262, 0.0
    %265 = vadd.xlane.f32.xlu0 %v264
    %v266 = vpop.xlane.xlu0 %265
    %s267 = sld [smem:[#allocation2 + $0x1]]
    %v268 = vstv %s267
    %v269 = vadd.f32 %v266, %v268
    %vm270 = vcmask 7168
    %v271 = vsel %vm270, %v259, %v269
    %vm272 = vcmask 15360
    %273 = vst.msk [vmem:[%s9] sm:$0xff] %vm272, %v271
    // Predicated region
    $region42: #{qnetwork_forward.1} parent=1 // pred_check
      _
    $region43: #{qnetwork_forward.1} parent=1 // pred_check_branch
      %275 = sbr.rel (0) target = $region45
    $region44: #{qnetwork_forward.1} parent=1 // pred_region
      _
    $region45: #{qnetwork_forward.1} parent=1 // pred_fallthru
      _
    // Predicated region
    $region46: #{qnetwork_forward.1} parent=1 // pred_check
      _
    $region47: #{qnetwork_forward.1} parent=1 // pred_check_branch
      %277 = sbr.rel (0) target = $region49
    $region48: #{qnetwork_forward.1} parent=1 // pred_region
      _
    $region49: #{qnetwork_forward.1} parent=1 // pred_fallthru
      _
    %278 = vsyncpa [#allocation3], 1

</llo_original>
